<compile_context>
chip_gen: v7x
topology: tpu7x:2x2x1
jax: 0.10.0
libtpu: 0.0.40
codegen_flags: <defaults>
</compile_context>

<pallas_src>
import jax
import jax.numpy as jnp
from jax.experimental import pallas as pl
from jax.experimental.pallas import tpu as pltpu

_LN_EPS = 1e-5


def linear_layernorm_kernel(x_ref, w_ref, bgb_ref, o_ref, acc_ref):
    """One (batch-tile, K-tile) grid step of LayerNorm(x @ W^T + b).

    x_ref   : [TB, TK]  input tile (native dtype, feeds the MXU directly)
    w_ref   : [TK, H]   pre-transposed weight tile (H lane-dense)
    bgb_ref : [3, H]    packed (bias, gamma, beta), f32
    o_ref   : [TB, H]   output tile
    acc_ref : [TB, H]   f32 VMEM accumulator, resident across the K axis
    """
    k = pl.program_id(1)

    @pl.when(k == 0)
    def _init():
        acc_ref[...] = jnp.zeros_like(acc_ref)

    acc_ref[...] += jnp.dot(x_ref[...], w_ref[...],
                            preferred_element_type=jnp.float32)

    @pl.when(k == pl.num_programs(1) - 1)
    def _finalize():
        y = acc_ref[...] + bgb_ref[0:1, :]                     # [TB, H], f32
        inv_h = jnp.float32(1.0 / y.shape[-1])                 # compile-time constant
        # One-pass statistics: both cross-lane reductions are independent (XLU overlap).
        s1 = jnp.sum(y, axis=-1, keepdims=True)
        s2 = jnp.sum(y * y, axis=-1, keepdims=True)
        mean = s1 * inv_h
        var = jnp.maximum(s2 * inv_h - mean * mean, 0.0)       # biased variance, clamped
        inv_std = jax.lax.rsqrt(var + jnp.float32(_LN_EPS))    # EUP slot
        out = (y - mean) * inv_std * bgb_ref[1:2, :] + bgb_ref[2:3, :]
        o_ref[...] = out.astype(o_ref.dtype)


def _spec(shape, index_map, n_buffers=2):
    """BlockSpec with optional explicit buffer count (grid-invariant inputs -> 1)."""
    if n_buffers != 2:
        try:
            return pl.BlockSpec(shape, index_map,
                                pipeline_mode=pl.Buffered(n_buffers))
        except Exception:   # older jax: no pipeline_mode / Buffered -> default buffering
            pass
    return pl.BlockSpec(shape, index_map)


def prepare_params(weight, bias, gamma, beta, compute_dtype=None):
    """One-time parameter prep (do NOT redo per forward call):
      weight [H, In] (PyTorch layout) -> [In, H] so the kernel RHS is H lane-dense,
      bias/gamma/beta packed into one [3, H] f32 slab."""
    w_t = jnp.transpose(weight)
    if compute_dtype is not None:
        w_t = w_t.astype(compute_dtype)          # explicit mixed-dtype policy (e.g. bf16)
    bgb = jnp.stack([bias, gamma, beta]).astype(jnp.float32)
    return w_t, bgb


def my_model_forward(x, w_t, bgb, *, block_b=512, block_k=512,
                     vmem_budget_bytes=40 * 1024 * 1024):
    """x: [B, In], w_t: [In, H] (pre-transposed), bgb: [3, H]  ->  [B, H]."""
    B, In = x.shape
    In_w, H = w_t.shape
    assert In == In_w, (In, In_w)

    xb = jnp.dtype(x.dtype).itemsize
    wb = jnp.dtype(w_t.dtype).itemsize

    # --- K (input_size) streaming: bounds VMEM for large In (v7x has only 64 MiB). ---
    if In > block_k and In % block_k == 0:
        tk = block_k
    else:
        tk = In                       # single K block, weight fully resident
    nk = In // tk

    # --- batch tile: largest tile under the VMEM budget; multiples of 256 (MXU) / 8. ---
    if B <= block_b:
        tb = B                        # single full-B block (full-dim block, no constraint)
    else:
        tb = max(8, (block_b // 8) * 8)
        if tb >= 256:
            tb = (tb // 256) * 256

    def vmem_bytes(tb_):
        return (2 * tb_ * tk * xb                         # x tile (double buffered)
                + (2 if nk > 1 else 1) * tk * H * wb      # weight tile
                + 8 * H * 4                               # packed b/gamma/beta (sublane pad)
                + 2 * tb_ * H * xb                        # out tile (double buffered)
                + tb_ * H * 4)                            # f32 accumulator scratch

    while tb > 8 and vmem_bytes(tb) > vmem_budget_bytes:
        tb = max(8, (tb // 2 // 8) * 8)

    nb = pl.cdiv(B, tb)               # ragged last batch tile handled by Pallas (masked)

    vmem_limit = int(min(96 * 1024 * 1024,
                         max(32 * 1024 * 1024, 2 * vmem_bytes(tb))))

    cost = pl.CostEstimate(
        flops=int(2 * B * In * H + 10 * B * H),
        transcendentals=int(B),
        bytes_accessed=int(B * In * xb + In * H * wb + 3 * H * 4 + B * H * xb),
    )

    def build_call(weight_buffers, const_buffers):
        in_specs = [
            pl.BlockSpec((tb, tk), lambda i, k: (i, k)),                    # x tile
            _spec((tk, H), lambda i, k: (k, 0), n_buffers=weight_buffers),  # weight tile
            _spec((3, H), lambda i, k: (0, 0), n_buffers=const_buffers),    # bias/gamma/beta
        ]
        return pl.pallas_call(
            linear_layernorm_kernel,
            out_shape=jax.ShapeDtypeStruct((B, H), x.dtype),
            grid_spec=pltpu.PrefetchScalarGridSpec(
                num_scalar_prefetch=0,
                grid=(nb, nk),
                in_specs=in_specs,
                out_specs=pl.BlockSpec((tb, H), lambda i, k: (i, 0)),
                scratch_shapes=[pltpu.VMEM((tb, H), jnp.float32)],
            ),
            compiler_params=pltpu.CompilerParams(
                dimension_semantics=("parallel", "arbitrary"),
                vmem_limit_bytes=vmem_limit,
            ),
            cost_estimate=cost,
        )

    try:
        # Grid-invariant inputs single-buffered (weight only when there is no K axis).
        return build_call(1 if nk == 1 else 2, 1)(x, w_t, bgb)
    except Exception:
        # Fallback: default double buffering everywhere.
        return build_call(2, 2)(x, w_t, bgb)


def _reference(x, weight, bias, gamma, beta, eps=_LN_EPS):
    y = x @ weight.T + bias
    mean = y.mean(-1, keepdims=True)
    var = ((y - mean) ** 2).mean(-1, keepdims=True)
    return (y - mean) / jnp.sqrt(var + eps) * gamma + beta


if __name__ == "__main__":
    # Small shapes consistent with the module: batch=8, input_size=16, hidden_size=32
    B, IN, HID = 8, 16, 32

    key = jax.random.PRNGKey(0)
    kx, kw, kb, kx2, kx3, kw3, kb3 = jax.random.split(key, 7)

    x = jax.random.normal(kx, (B, IN), dtype=jnp.float32)
    # Deterministic init mimicking nn.Linear uniform(-1/sqrt(in), 1/sqrt(in))
    bound = 1.0 / jnp.sqrt(jnp.float32(IN))
    weight = jax.random.uniform(kw, (HID, IN), jnp.float32, -bound, bound)
    bias = jax.random.uniform(kb, (HID,), jnp.float32, -bound, bound)
    gamma = jnp.ones((HID,), jnp.float32)     # nn.LayerNorm defaults
    beta = jnp.zeros((HID,), jnp.float32)

    w_t, bgb = prepare_params(weight, bias, gamma, beta)

    out = jax.block_until_ready(my_model_forward(x, w_t, bgb))
    ref = _reference(x, weight, bias, gamma, beta)
    assert out.shape == (B, HID)
    assert jnp.allclose(out, ref, atol=1e-5, rtol=1e-5), "mismatch vs reference (small)"

    # Tiled + ragged batch path (multi-block grid, partial last tile, no wrapper pad).
    B2 = 300
    x2 = jax.random.normal(kx2, (B2, IN), dtype=jnp.float32)
    out2 = jax.block_until_ready(my_model_forward(x2, w_t, bgb, block_b=128))
    ref2 = _reference(x2, weight, bias, gamma, beta)
    assert out2.shape == (B2, HID)
    assert jnp.allclose(out2, ref2, atol=1e-5, rtol=1e-5), "mismatch vs reference (tiled)"

    # K-streaming path (input_size split over reduction grid axis + VMEM accumulator).
    B3, IN3, HID3 = 32, 1024, 256
    x3 = jax.random.normal(kx3, (B3, IN3), dtype=jnp.float32)
    bound3 = 1.0 / jnp.sqrt(jnp.float32(IN3))
    weight3 = jax.random.uniform(kw3, (HID3, IN3), jnp.float32, -bound3, bound3)
    bias3 = jax.random.uniform(kb3, (HID3,), jnp.float32, -bound3, bound3)
    gamma3 = jnp.ones((HID3,), jnp.float32)
    beta3 = jnp.zeros((HID3,), jnp.float32)
    w_t3, bgb3 = prepare_params(weight3, bias3, gamma3, beta3)
    out3 = jax.block_until_ready(my_model_forward(x3, w_t3, bgb3, block_k=512))
    ref3 = _reference(x3, weight3, bias3, gamma3, beta3)
    assert out3.shape == (B3, HID3)
    assert jnp.allclose(out3, ref3, atol=1e-3, rtol=1e-3), "mismatch vs reference (k-stream)"

    print("KERNEL_OK")
</pallas_src>

<mosaic_0001>
module attributes {stable_mosaic.version = 11 : i64} {
  func.func @linear_layernorm_kernel(%arg0: i32, %arg1: i32, %arg2: memref<8x16xf32, #tpu.memory_space<vmem>>, %arg3: memref<16x32xf32, #tpu.memory_space<vmem>>, %arg4: memref<3x32xf32, #tpu.memory_space<vmem>>, %arg5: memref<8x32xf32, #tpu.memory_space<vmem>>, %arg6: memref<8x32xf32, #tpu.memory_space<vmem>>) attributes {dimension_semantics = [#tpu.dimension_semantics<parallel>, #tpu.dimension_semantics<arbitrary>], iteration_bounds = array<i64: 1, 1>, scalar_prefetch = 0 : i64, scratch_operands = 1 : i64, tpu.core_type = #tpu.core_type<tc>, window_params = [{transform_indices = @transform_0, window_bounds = array<i64: 8, 16>}, {pipeline_mode = #tpu.pipeline_mode<synchronous>, transform_indices = @transform_1, window_bounds = array<i64: 16, 32>}, {pipeline_mode = #tpu.pipeline_mode<synchronous>, transform_indices = @transform_2, window_bounds = array<i64: 3, 32>}, {transform_indices = @transform_3, window_bounds = array<i64: 8, 32>}]} {
    %c0_i32 = arith.constant 0 : i32
    %0 = arith.cmpi eq, %arg1, %c0_i32 : i32
    %1 = arith.extui %0 : i1 to i32
    %c0_i32_0 = arith.constant 0 : i32
    %2 = arith.cmpi ne, %1, %c0_i32_0 : i32
    scf.if %2 {
      %cst_10 = arith.constant 0.000000e+00 : f32
      %12 = vector.broadcast %cst_10 : f32 to vector<8x32xf32>
      %c0_11 = arith.constant 0 : index
      %c0_12 = arith.constant 0 : index
      %13 = vector.load %arg6[%c0_11, %c0_12] : memref<8x32xf32, #tpu.memory_space<vmem>>, vector<8x32xf32>
      tpu.vector_store %arg6[%c0_11, %c0_12], %12 {strides = array<i32>} : memref<8x32xf32, #tpu.memory_space<vmem>>, vector<8x32xf32>,
    } else {
    }
    %c0 = arith.constant 0 : index
    %c0_1 = arith.constant 0 : index
    %3 = vector.load %arg6[%c0, %c0_1] : memref<8x32xf32, #tpu.memory_space<vmem>>, vector<8x32xf32>
    %c0_2 = arith.constant 0 : index
    %c0_3 = arith.constant 0 : index
    %4 = vector.load %arg2[%c0_2, %c0_3] : memref<8x16xf32, #tpu.memory_space<vmem>>, vector<8x16xf32>
    %c0_4 = arith.constant 0 : index
    %c0_5 = arith.constant 0 : index
    %5 = vector.load %arg3[%c0_4, %c0_5] : memref<16x32xf32, #tpu.memory_space<vmem>>, vector<16x32xf32>
    %cst = arith.constant dense<0.000000e+00> : vector<8x32xf32>
    %6 = tpu.matmul %4, %5, %cst {dimension_numbers = #tpu.dot_dimension_numbers<[1], [0], [0], [1], [0, 0, 1, 1], [], []>} : vector<8x16xf32>, vector<16x32xf32>, vector<8x32xf32> -> vector<8x32xf32>
    %7 = arith.addf %3, %6 : vector<8x32xf32>
    %c0_6 = arith.constant 0 : index
    %c0_7 = arith.constant 0 : index
    %8 = vector.load %arg6[%c0_6, %c0_7] : memref<8x32xf32, #tpu.memory_space<vmem>>, vector<8x32xf32>
    tpu.vector_store %arg6[%c0_6, %c0_7], %7 {strides = array<i32>} : memref<8x32xf32, #tpu.memory_space<vmem>>, vector<8x32xf32>,
    %c0_i32_8 = arith.constant 0 : i32
    %9 = arith.cmpi eq, %arg1, %c0_i32_8 : i32
    %10 = arith.extui %9 : i1 to i32
    %c0_i32_9 = arith.constant 0 : i32
    %11 = arith.cmpi ne, %10, %c0_i32_9 : i32
    scf.if %11 {
      %c0_10 = arith.constant 0 : index
      %c0_11 = arith.constant 0 : index
      %12 = vector.load %arg6[%c0_10, %c0_11] : memref<8x32xf32, #tpu.memory_space<vmem>>, vector<8x32xf32>
      %c0_12 = arith.constant 0 : index
      %c0_13 = arith.constant 0 : index
      %13 = vector.load %arg4[%c0_12, %c0_13] : memref<3x32xf32, #tpu.memory_space<vmem>>, vector<1x32xf32>
      %14 = vector.broadcast %13 : vector<1x32xf32> to vector<8x32xf32>
      %15 = arith.addf %12, %14 : vector<8x32xf32>
      %cst_14 = arith.constant dense<0.000000e+00> : vector<8xf32>
      %16 = vector.multi_reduction <add>, %15, %cst_14 [1] : vector<8x32xf32> to vector<8xf32>
      %17 = vector.shape_cast %16 : vector<8xf32> to vector<8x1xf32>
      %18 = arith.mulf %15, %15 : vector<8x32xf32>
      %cst_15 = arith.constant dense<0.000000e+00> : vector<8xf32>
      %19 = vector.multi_reduction <add>, %18, %cst_15 [1] : vector<8x32xf32> to vector<8xf32>
      %20 = vector.shape_cast %19 : vector<8xf32> to vector<8x1xf32>
      %cst_16 = arith.constant 3.125000e-02 : f32
      %21 = vector.broadcast %cst_16 : f32 to vector<8x1xf32>
      %22 = arith.mulf %17, %21 : vector<8x1xf32>
      %cst_17 = arith.constant 3.125000e-02 : f32
      %23 = vector.broadcast %cst_17 : f32 to vector<8x1xf32>
      %24 = arith.mulf %20, %23 : vector<8x1xf32>
      %25 = arith.mulf %22, %22 : vector<8x1xf32>
      %26 = arith.subf %24, %25 : vector<8x1xf32>
      %cst_18 = arith.constant 0.000000e+00 : f32
      %27 = vector.broadcast %cst_18 : f32 to vector<8x1xf32>
      %28 = arith.maximumf %26, %27 : vector<8x1xf32>
      %cst_19 = arith.constant 9.99999974E-6 : f32
      %29 = vector.broadcast %cst_19 : f32 to vector<8x1xf32>
      %30 = arith.addf %28, %29 : vector<8x1xf32>
      %31 = math.rsqrt %30 : vector<8x1xf32>
      %32 = vector.broadcast %22 : vector<8x1xf32> to vector<8x32xf32>
      %33 = arith.subf %15, %32 : vector<8x32xf32>
      %34 = vector.broadcast %31 : vector<8x1xf32> to vector<8x32xf32>
      %35 = arith.mulf %33, %34 : vector<8x32xf32>
      %c1 = arith.constant 1 : index
      %c0_20 = arith.constant 0 : index
      %36 = vector.load %arg4[%c1, %c0_20] : memref<3x32xf32, #tpu.memory_space<vmem>>, vector<1x32xf32>
      %37 = vector.broadcast %36 : vector<1x32xf32> to vector<8x32xf32>
      %38 = arith.mulf %35, %37 : vector<8x32xf32>
      %c2 = arith.constant 2 : index
      %c0_21 = arith.constant 0 : index
      %39 = vector.load %arg4[%c2, %c0_21] : memref<3x32xf32, #tpu.memory_space<vmem>>, vector<1x32xf32>
      %40 = vector.broadcast %39 : vector<1x32xf32> to vector<8x32xf32>
      %41 = arith.addf %38, %40 : vector<8x32xf32>
      %c0_22 = arith.constant 0 : index
      %c0_23 = arith.constant 0 : index
      %42 = vector.load %arg5[%c0_22, %c0_23] : memref<8x32xf32, #tpu.memory_space<vmem>>, vector<8x32xf32>
      tpu.vector_store %arg5[%c0_22, %c0_23], %41 {strides = array<i32>} : memref<8x32xf32, #tpu.memory_space<vmem>>, vector<8x32xf32>,
    } else {
    }
    return
  }
  func.func @transform_0(%arg0: i32, %arg1: i32) -> (i32, i32) {
    %c0_i32 = arith.constant 0 : i32
    return %arg0, %arg1 : i32, i32
  }
  func.func @transform_1(%arg0: i32, %arg1: i32) -> (i32, i32) {
    %c0_i32 = arith.constant 0 : i32
    %c0_i32_0 = arith.constant 0 : i32
    return %arg1, %c0_i32 : i32, i32
  }
  func.func @transform_2(%arg0: i32, %arg1: i32) -> (i32, i32) {
    %c0_i32 = arith.constant 0 : i32
    %c0_i32_0 = arith.constant 0 : i32
    %c0_i32_1 = arith.constant 0 : i32
    return %c0_i32, %c0_i32_0 : i32, i32
  }
  func.func @transform_3(%arg0: i32, %arg1: i32) -> (i32, i32) {
    %c0_i32 = arith.constant 0 : i32
    %c0_i32_0 = arith.constant 0 : i32
    return %arg0, %c0_i32 : i32, i32
  }
}

module attributes {stable_mosaic.version = 11 : i64} {
  func.func @linear_layernorm_kernel(%arg0: i32, %arg1: i32, %arg2: memref<8x16xf32, #tpu.memory_space<vmem>>, %arg3: memref<16x32xf32, #tpu.memory_space<vmem>>, %arg4: memref<3x32xf32, #tpu.memory_space<vmem>>, %arg5: memref<8x32xf32, #tpu.memory_space<vmem>>, %arg6: memref<8x32xf32, #tpu.memory_space<vmem>>) attributes {dimension_semantics = [#tpu.dimension_semantics<parallel>, #tpu.dimension_semantics<arbitrary>], iteration_bounds = array<i64: 1, 1>, scalar_prefetch = 0 : i64, scratch_operands = 1 : i64, tpu.core_type = #tpu.core_type<tc>, window_params = [{transform_indices = @transform_0, window_bounds = array<i64: 8, 16>}, {transform_indices = @transform_1, window_bounds = array<i64: 16, 32>}, {pipeline_mode = #tpu.pipeline_mode<synchronous>, transform_indices = @transform_2, window_bounds = array<i64: 3, 32>}, {transform_indices = @transform_3, window_bounds = array<i64: 8, 32>}]} {
    %c0_i32 = arith.constant 0 : i32
    %0 = arith.cmpi eq, %arg1, %c0_i32 : i32
    %1 = arith.extui %0 : i1 to i32
    %c0_i32_0 = arith.constant 0 : i32
    %2 = arith.cmpi ne, %1, %c0_i32_0 : i32
    scf.if %2 {
      %cst_10 = arith.constant 0.000000e+00 : f32
      %12 = vector.broadcast %cst_10 : f32 to vector<8x32xf32>
      %c0_11 = arith.constant 0 : index
      %c0_12 = arith.constant 0 : index
      %13 = vector.load %arg6[%c0_11, %c0_12] : memref<8x32xf32, #tpu.memory_space<vmem>>, vector<8x32xf32>
      tpu.vector_store %arg6[%c0_11, %c0_12], %12 {strides = array<i32>} : memref<8x32xf32, #tpu.memory_space<vmem>>, vector<8x32xf32>,
    } else {
    }
    %c0 = arith.constant 0 : index
    %c0_1 = arith.constant 0 : index
    %3 = vector.load %arg6[%c0, %c0_1] : memref<8x32xf32, #tpu.memory_space<vmem>>, vector<8x32xf32>
    %c0_2 = arith.constant 0 : index
    %c0_3 = arith.constant 0 : index
    %4 = vector.load %arg2[%c0_2, %c0_3] : memref<8x16xf32, #tpu.memory_space<vmem>>, vector<8x16xf32>
    %c0_4 = arith.constant 0 : index
    %c0_5 = arith.constant 0 : index
    %5 = vector.load %arg3[%c0_4, %c0_5] : memref<16x32xf32, #tpu.memory_space<vmem>>, vector<16x32xf32>
    %cst = arith.constant dense<0.000000e+00> : vector<8x32xf32>
    %6 = tpu.matmul %4, %5, %cst {dimension_numbers = #tpu.dot_dimension_numbers<[1], [0], [0], [1], [0, 0, 1, 1], [], []>} : vector<8x16xf32>, vector<16x32xf32>, vector<8x32xf32> -> vector<8x32xf32>
    %7 = arith.addf %3, %6 : vector<8x32xf32>
    %c0_6 = arith.constant 0 : index
    %c0_7 = arith.constant 0 : index
    %8 = vector.load %arg6[%c0_6, %c0_7] : memref<8x32xf32, #tpu.memory_space<vmem>>, vector<8x32xf32>
    tpu.vector_store %arg6[%c0_6, %c0_7], %7 {strides = array<i32>} : memref<8x32xf32, #tpu.memory_space<vmem>>, vector<8x32xf32>,
    %c0_i32_8 = arith.constant 0 : i32
    %9 = arith.cmpi eq, %arg1, %c0_i32_8 : i32
    %10 = arith.extui %9 : i1 to i32
    %c0_i32_9 = arith.constant 0 : i32
    %11 = arith.cmpi ne, %10, %c0_i32_9 : i32
    scf.if %11 {
      %c0_10 = arith.constant 0 : index
      %c0_11 = arith.constant 0 : index
      %12 = vector.load %arg6[%c0_10, %c0_11] : memref<8x32xf32, #tpu.memory_space<vmem>>, vector<8x32xf32>
      %c0_12 = arith.constant 0 : index
      %c0_13 = arith.constant 0 : index
      %13 = vector.load %arg4[%c0_12, %c0_13] : memref<3x32xf32, #tpu.memory_space<vmem>>, vector<1x32xf32>
      %14 = vector.broadcast %13 : vector<1x32xf32> to vector<8x32xf32>
      %15 = arith.addf %12, %14 : vector<8x32xf32>
      %cst_14 = arith.constant dense<0.000000e+00> : vector<8xf32>
      %16 = vector.multi_reduction <add>, %15, %cst_14 [1] : vector<8x32xf32> to vector<8xf32>
      %17 = vector.shape_cast %16 : vector<8xf32> to vector<8x1xf32>
      %18 = arith.mulf %15, %15 : vector<8x32xf32>
      %cst_15 = arith.constant dense<0.000000e+00> : vector<8xf32>
      %19 = vector.multi_reduction <add>, %18, %cst_15 [1] : vector<8x32xf32> to vector<8xf32>
      %20 = vector.shape_cast %19 : vector<8xf32> to vector<8x1xf32>
      %cst_16 = arith.constant 3.125000e-02 : f32
      %21 = vector.broadcast %cst_16 : f32 to vector<8x1xf32>
      %22 = arith.mulf %17, %21 : vector<8x1xf32>
      %cst_17 = arith.constant 3.125000e-02 : f32
      %23 = vector.broadcast %cst_17 : f32 to vector<8x1xf32>
      %24 = arith.mulf %20, %23 : vector<8x1xf32>
      %25 = arith.mulf %22, %22 : vector<8x1xf32>
      %26 = arith.subf %24, %25 : vector<8x1xf32>
      %cst_18 = arith.constant 0.000000e+00 : f32
      %27 = vector.broadcast %cst_18 : f32 to vector<8x1xf32>
      %28 = arith.maximumf %26, %27 : vector<8x1xf32>
      %cst_19 = arith.constant 9.99999974E-6 : f32
      %29 = vector.broadcast %cst_19 : f32 to vector<8x1xf32>
      %30 = arith.addf %28, %29 : vector<8x1xf32>
      %31 = math.rsqrt %30 : vector<8x1xf32>
      %32 = vector.broadcast %22 : vector<8x1xf32> to vector<8x32xf32>
      %33 = arith.subf %15, %32 : vector<8x32xf32>
      %34 = vector.broadcast %31 : vector<8x1xf32> to vector<8x32xf32>
      %35 = arith.mulf %33, %34 : vector<8x32xf32>
      %c1 = arith.constant 1 : index
      %c0_20 = arith.constant 0 : index
      %36 = vector.load %arg4[%c1, %c0_20] : memref<3x32xf32, #tpu.memory_space<vmem>>, vector<1x32xf32>
      %37 = vector.broadcast %36 : vector<1x32xf32> to vector<8x32xf32>
      %38 = arith.mulf %35, %37 : vector<8x32xf32>
      %c2 = arith.constant 2 : index
      %c0_21 = arith.constant 0 : index
      %39 = vector.load %arg4[%c2, %c0_21] : memref<3x32xf32, #tpu.memory_space<vmem>>, vector<1x32xf32>
      %40 = vector.broadcast %39 : vector<1x32xf32> to vector<8x32xf32>
      %41 = arith.addf %38, %40 : vector<8x32xf32>
      %c0_22 = arith.constant 0 : index
      %c0_23 = arith.constant 0 : index
      %42 = vector.load %arg5[%c0_22, %c0_23] : memref<8x32xf32, #tpu.memory_space<vmem>>, vector<8x32xf32>
      tpu.vector_store %arg5[%c0_22, %c0_23], %41 {strides = array<i32>} : memref<8x32xf32, #tpu.memory_space<vmem>>, vector<8x32xf32>,
    } else {
    }
    return
  }
  func.func @transform_0(%arg0: i32, %arg1: i32) -> (i32, i32) {
    %c0_i32 = arith.constant 0 : i32
    return %arg0, %arg1 : i32, i32
  }
  func.func @transform_1(%arg0: i32, %arg1: i32) -> (i32, i32) {
    %c0_i32 = arith.constant 0 : i32
    %c0_i32_0 = arith.constant 0 : i32
    return %arg1, %c0_i32 : i32, i32
  }
  func.func @transform_2(%arg0: i32, %arg1: i32) -> (i32, i32) {
    %c0_i32 = arith.constant 0 : i32
    %c0_i32_0 = arith.constant 0 : i32
    %c0_i32_1 = arith.constant 0 : i32
    return %c0_i32, %c0_i32_0 : i32, i32
  }
  func.func @transform_3(%arg0: i32, %arg1: i32) -> (i32, i32) {
    %c0_i32 = arith.constant 0 : i32
    %c0_i32_0 = arith.constant 0 : i32
    return %arg0, %c0_i32 : i32, i32
  }
}

</mosaic_0001>

<llo_original>
// kernel: tpu_custom_call.1
$region0: #{tpu_custom_call.1}
  #allocation0 [shape = 'u32[]', space=smem, size = 0x4, offset = 0x4, fixed_abs, tag = 'smem constant byte address 0x4 - core index']
  #allocation1 [shape = 'u32[144,128]{1,0:T(1,128)}', space=vmem, size = 0x12000, scoped, tag = 'internal scratch']
  #allocation2 [shape = 'f32[8,32]{1,0:T(8,128)}', space=vmem, size = 0x1000, scoped, tag = 'scratch operand']
  %s0 = inlined_call_operand.hbm [shape: f32[8,16], index: 0, kind: input, shape index: {}]
  %s1 = inlined_call_operand.hbm [shape: f32[16,32], index: 1, kind: input, shape index: {}]
  %s2 = inlined_call_operand.vmem [shape: f32[3,32], index: 2, kind: input, shape index: {}]
  %s3 = inlined_call_operand.hbm [shape: f32[8,32], index: 3, kind: output, shape index: {}]
  %s4 = sld [smem:[#allocation0]]
  $region38: #{tpu_custom_call.1} parent=0
    _
  %s6 = ssub.s32 1, %s4
  %s7 = scalar_select 0, %s6, %s4
  $region1: #{tpu_custom_call.1} parent=0
    #allocation3 [shape = 'u8[4096]{0}', space=vmem, size = 0x1000, scoped, tag = 'input window, operand 0, single buffered']
    #allocation4 [shape = 's32[1]{0}', space=sflag, size = 0x4, scoped, tag = 'scoped memory for tpu_custom_call.1']
    #allocation5 [shape = 's32[1]{0}', space=sflag, size = 0x4, scoped, tag = 'scoped memory for tpu_custom_call.1']
    #allocation6 [shape = 'u8[8192]{0}', space=vmem, size = 0x2000, scoped, tag = 'input window, operand 1, single buffered']
    #allocation7 [shape = 's32[1]{0}', space=sflag, size = 0x4, scoped, tag = 'scoped memory for tpu_custom_call.1']
    #allocation8 [shape = 'u8[4096]{0}', space=vmem, size = 0x1000, scoped, tag = 'output window, operand 0, single buffered']
    %8 = vsyncpa [#allocation4], 0
    %9 = vsyncpa [#allocation7], 0
    %10 = vsyncpa [#allocation5], 0
    // Predicated region
    $region2: #{tpu_custom_call.1} parent=1 // pred_check
      _
    $region3: #{tpu_custom_call.1} parent=1 // pred_check_branch
      %12 = sbr.rel (0) target = $region5
    $region4: #{tpu_custom_call.1} parent=1 // pred_region
      %s14 = ssub.s32 128, 128
      %15 = vsyncadd [#allocation4], %s14
      %s17 = sshll.u32 [#allocation3], 4
      %s18 = int_to_ptr.vmem [resolvable:$true] %s17
      %20 = dma.hbm_to_vmem [thread:$0]  %s0, 128, %s18, [#allocation4]
    $region5: #{tpu_custom_call.1} parent=1 // pred_fallthru
      _
    // Predicated region
    $region6: #{tpu_custom_call.1} parent=1 // pred_check
      _
    $region7: #{tpu_custom_call.1} parent=1 // pred_check_branch
      %22 = sbr.rel (0) target = $region9
    $region8: #{tpu_custom_call.1} parent=1 // pred_region
      %s24 = ssub.s32 256, 256
      %25 = vsyncadd [#allocation7], %s24
      %s26 = sshll.u32 [#allocation6], 4
      %s27 = int_to_ptr.vmem [resolvable:$true] %s26
      %32 = dma.hbm_to_vmem [thread:$0]  %s1, 256, %s27, [#allocation7], 128, 128, 8
    $region9: #{tpu_custom_call.1} parent=1 // pred_fallthru
      _
    // Predicated region
    $region10: #{tpu_custom_call.1} parent=1 // pred_check
      _
    $region11: #{tpu_custom_call.1} parent=1 // pred_check_branch
      %34 = sbr.rel (0) target = $region13
    $region12: #{tpu_custom_call.1} parent=1 // pred_region
      _
    $region13: #{tpu_custom_call.1} parent=1 // pred_fallthru
      _
    // Predicated region
    $region14: #{tpu_custom_call.1} parent=1 // pred_check
      _
    $region15: #{tpu_custom_call.1} parent=1 // pred_check_branch
      %36 = sbr.rel (0) target = $region17
    $region16: #{tpu_custom_call.1} parent=1 // pred_region
      %37 = dma.done [#allocation4], 128
    $region17: #{tpu_custom_call.1} parent=1 // pred_fallthru
      _
    // Predicated region
    $region18: #{tpu_custom_call.1} parent=1 // pred_check
      _
    $region19: #{tpu_custom_call.1} parent=1 // pred_check_branch
      %39 = sbr.rel (0) target = $region21
    $region20: #{tpu_custom_call.1} parent=1 // pred_region
      %40 = dma.done [#allocation7], 256
    $region21: #{tpu_custom_call.1} parent=1 // pred_fallthru
      _
    %p41 = scmp.eq.s32.totalorder 0, 0
    // Predicated region
    $region22: #{tpu_custom_call.1} parent=1 // pred_check
      %p42 = pneg %p41
    $region23: #{tpu_custom_call.1} parent=1 // pred_check_branch
      %44 = sbr.rel (%p42) target = $region25
    $region24: #{tpu_custom_call.1} parent=1 // pred_region
      %vm45 = vcmask 261120
      %46 = vst.msk [vmem:[#allocation2] sm:$0xff] %vm45, 0.0
    $region25: #{tpu_custom_call.1} parent=1 // pred_fallthru
      _
    %v47 = vld [vmem:[#allocation2] sm:$0xff]
    %v48 = vld [vmem:[#allocation3] sm:$0xff]
    %v49 = vld [vmem:[#allocation6] sm:$0xff]
    %v50 = vld [vmem:[#allocation6 + $0x8] sm:$0xff]
    %vm51 = vcmask 130048
    %v53 = vsel %vm51, %v48, 0
    %55 = vmatprep.subr.mxu0 0.0
    %56 = vmatpush1.msra.mxu0 %v49
    %57 = vmatprep.subr.mxu0 0.0
    %58 = vmatpush1.msra.mxu0 %v50
    %59 = vmatprep.subr.mxu0 0.0
    %60 = vmatpush1.msra.mxu0 0.0
    %61 = vmatprep.subr.mxu0 0.0
    %62 = vmatpush1.msra.mxu0 0.0
    %63 = vmatprep.subr.mxu0 0.0
    %64 = vmatpush1.msra.mxu0 0.0
    %65 = vmatprep.subr.mxu0 0.0
    %66 = vmatpush1.msra.mxu0 0.0
    %67 = vmatprep.subr.mxu0 0.0
    %68 = vmatpush1.msra.mxu0 0.0
    %69 = vmatprep.subr.mxu0 0.0
    %70 = vmatpush1.msra.mxu0 0.0
    %71 = vmatprep.subr.mxu0 0.0
    %72 = vmatpush1.msra.mxu0 0.0
    %73 = vmatprep.subr.mxu0 0.0
    %74 = vmatpush1.msra.mxu0 0.0
    %75 = vmatprep.subr.mxu0 0.0
    %76 = vmatpush1.msra.mxu0 0.0
    %77 = vmatprep.subr.mxu0 0.0
    %78 = vmatpush1.msra.mxu0 0.0
    %79 = vmatprep.subr.mxu0 0.0
    %80 = vmatpush1.msra.mxu0 0.0
    %81 = vmatprep.subr.mxu0 0.0
    %82 = vmatpush1.msra.mxu0 0.0
    %83 = vmatprep.subr.mxu0 0.0
    %84 = vmatpush1.msra.mxu0 0.0
    %85 = vmatprep.subr.mxu0 0.0
    %86 = vmatpush1.msra.mxu0 0.0
    %87 = vmatprep.subr.mxu0 0.0
    %88 = vmatpush1.msra.mxu0 0.0
    %89 = vmatprep.subr.mxu0 0.0
    %90 = vmatpush1.msra.mxu0 0.0
    %91 = vmatprep.subr.mxu0 0.0
    %92 = vmatpush1.msra.mxu0 0.0
    %93 = vmatprep.subr.mxu0 0.0
    %94 = vmatpush1.msra.mxu0 0.0
    %95 = vmatprep.subr.mxu0 0.0
    %96 = vmatpush1.msra.mxu0 0.0
    %97 = vmatprep.subr.mxu0 0.0
    %98 = vmatpush1.msra.mxu0 0.0
    %99 = vmatprep.subr.mxu0 0.0
    %100 = vmatpush1.msra.mxu0 0.0
    %101 = vmatprep.subr.mxu0 0.0
    %102 = vmatpush1.msra.mxu0 0.0
    %103 = vmatprep.subr.mxu0 0.0
    %104 = vmatpush1.msra.mxu0 0.0
    %105 = vmatprep.subr.mxu0 0.0
    %106 = vmatpush1.msra.mxu0 0.0
    %107 = vmatprep.subr.mxu0 0.0
    %108 = vmatpush1.msra.mxu0 0.0
    %109 = vmatprep.subr.mxu0 0.0
    %110 = vmatpush1.msra.mxu0 0.0
    %111 = vmatprep.subr.mxu0 0.0
    %112 = vmatpush1.msra.mxu0 0.0
    %113 = vmatprep.subr.mxu0 0.0
    %114 = vmatpush1.msra.mxu0 0.0
    %115 = vmatprep.subr.mxu0 0.0
    %116 = vmatpush1.msra.mxu0 0.0
    %117 = vmatprep.subr.mxu0 0.0
    %118 = vmatpush1.msra.mxu0 0.0
    %119 = vmatprep.mubr.f32.mxu0 0.0
    %120 = vmatmul.mubr.f32.gmra.mrb[0].mxu0 %v53
    %v121 = vpop.f32.mrb[0].mxu0
    %v122 = vadd.f32 0.0, %v121
    %v123 = vpop.f32.mrb[0].mxu0
    %124 = vdwg.mxu0
    %v125 = vadd.f32 %v47, %v122
    %vm126 = vcmask 261120
    %127 = vst.msk [vmem:[#allocation2] sm:$0xff] %vm126, %v125
    // Predicated region
    $region26: #{tpu_custom_call.1} parent=1 // pred_check
      %p128 = pneg %p41
    $region27: #{tpu_custom_call.1} parent=1 // pred_check_branch
      %130 = sbr.rel (%p128) target = $region29
    $region28: #{tpu_custom_call.1} parent=1 // pred_region
      %v131 = vld [vmem:[#allocation2] sm:$0xff]
      %v132 = vld [vmem:[%s2] sm:$0x1]
      %v133 = vlaneseq
      %v134 = vshrl.u32 %v133, 7
      %v135 = vsub.s32 0, %v134
      %v136 = vrot.slane %v132, %v135
      %v137 = vadd.f32 %v131, %v136
      %v138 = vsel %vm126, %v137, 0.0
      %139 = vadd.xlane.f32.xlu0 %v138
      %v140 = vpop.xlane.xlu0 %139
      %v141 = vmul.f32 %v137, %v137
      %v142 = vsel %vm126, %v141, 0.0
      %143 = vadd.xlane.f32.xlu0 %v142
      %v144 = vpop.xlane.xlu0 %143
      %v145 = vmul.f32 %v140, 0.03125
      %v146 = vmul.f32 %v144, 0.03125
      %v147 = vmul.f32 %v145, %v145
      %v148 = vsub.f32 %v146, %v147
      %v149 = vmax.f32 %v148, 0.0
      %v150 = vadd.f32 %v149, 1e-05
      %v151 = vrsqrt.pop %v150
      %v152 = vsub.f32 %v137, %v145
      %v153 = vmul.f32 %v152, %v151
      %v154 = vld [vmem:[%s2 + $0x1] sm:$0x1]
      %v155 = vlaneseq
      %v156 = vshrl.u32 %v155, 7
      %v157 = vsub.s32 0, %v156
      %v158 = vrot.slane %v154, %v157
      %v159 = vmul.f32 %v153, %v158
      %v160 = vld [vmem:[%s2 + $0x2] sm:$0x1]
      %v161 = vlaneseq
      %v162 = vshrl.u32 %v161, 7
      %v163 = vsub.s32 0, %v162
      %v164 = vrot.slane %v160, %v163
      %v165 = vadd.f32 %v159, %v164
      %166 = vst.msk [vmem:[#allocation8] sm:$0xff] %vm126, %v165
    $region29: #{tpu_custom_call.1} parent=1 // pred_fallthru
      _
    // Predicated region
    $region30: #{tpu_custom_call.1} parent=1 // pred_check
      _
    $region31: #{tpu_custom_call.1} parent=1 // pred_check_branch
      %168 = sbr.rel (0) target = $region33
    $region32: #{tpu_custom_call.1} parent=1 // pred_region
      %s170 = ssub.s32 128, 128
      %171 = vsyncadd [#allocation5], %s170
      %s173 = sshll.u32 [#allocation8], 4
      %s174 = int_to_ptr.vmem [resolvable:$true] %s173
      %176 = dma.vmem_to_hbm [thread:$0]  %s174, 128, %s3, [#allocation5]
    $region33: #{tpu_custom_call.1} parent=1 // pred_fallthru
      _
    // Predicated region
    $region34: #{tpu_custom_call.1} parent=1 // pred_check
      _
    $region35: #{tpu_custom_call.1} parent=1 // pred_check_branch
      %178 = sbr.rel (0) target = $region37
    $region36: #{tpu_custom_call.1} parent=1 // pred_region
      %179 = dma.done [#allocation5], 128
    $region37: #{tpu_custom_call.1} parent=1 // pred_fallthru
      _
    %180 = vsyncpa [#allocation4], 1
    %181 = vsyncpa [#allocation7], 1
    %182 = vsyncpa [#allocation5], 1

// kernel: tpu_custom_call.1
$region0: #{tpu_custom_call.1}
  #allocation0 [shape = 'u32[]', space=smem, size = 0x4, offset = 0x4, fixed_abs, tag = 'smem constant byte address 0x4 - core index']
  #allocation1 [shape = 'u32[144,128]{1,0:T(1,128)}', space=vmem, size = 0x12000, scoped, tag = 'internal scratch']
  #allocation2 [shape = 'f32[8,32]{1,0:T(8,128)}', space=vmem, size = 0x1000, scoped, tag = 'scratch operand']
  %s0 = inlined_call_operand.hbm [shape: f32[8,16], index: 0, kind: input, shape index: {}]
  %s1 = inlined_call_operand.hbm [shape: f32[16,32], index: 1, kind: input, shape index: {}]
  %s2 = inlined_call_operand.vmem [shape: f32[3,32], index: 2, kind: input, shape index: {}]
  %s3 = inlined_call_operand.hbm [shape: f32[8,32], index: 3, kind: output, shape index: {}]
  %s4 = sld [smem:[#allocation0]]
  $region38: #{tpu_custom_call.1} parent=0
    _
  %s6 = ssub.s32 1, %s4
  %s7 = scalar_select 0, %s6, %s4
  $region1: #{tpu_custom_call.1} parent=0
    #allocation3 [shape = 'u8[4096]{0}', space=vmem, size = 0x1000, scoped, tag = 'input window, operand 0, single buffered']
    #allocation4 [shape = 's32[1]{0}', space=sflag, size = 0x4, scoped, tag = 'scoped memory for tpu_custom_call.1']
    #allocation5 [shape = 's32[1]{0}', space=sflag, size = 0x4, scoped, tag = 'scoped memory for tpu_custom_call.1']
    #allocation6 [shape = 'u8[8192]{0}', space=vmem, size = 0x2000, scoped, tag = 'input window, operand 1, single buffered']
    #allocation7 [shape = 's32[1]{0}', space=sflag, size = 0x4, scoped, tag = 'scoped memory for tpu_custom_call.1']
    #allocation8 [shape = 'u8[4096]{0}', space=vmem, size = 0x1000, scoped, tag = 'output window, operand 0, single buffered']
    %8 = vsyncpa [#allocation4], 0
    %9 = vsyncpa [#allocation7], 0
    %10 = vsyncpa [#allocation5], 0
    // Predicated region
    $region2: #{tpu_custom_call.1} parent=1 // pred_check
      _
    $region3: #{tpu_custom_call.1} parent=1 // pred_check_branch
      %12 = sbr.rel (0) target = $region5
    $region4: #{tpu_custom_call.1} parent=1 // pred_region
      %s14 = ssub.s32 128, 128
      %15 = vsyncadd [#allocation4], %s14
      %s17 = sshll.u32 [#allocation3], 4
      %s18 = int_to_ptr.vmem [resolvable:$true] %s17
      %20 = dma.hbm_to_vmem [thread:$0]  %s0, 128, %s18, [#allocation4]
    $region5: #{tpu_custom_call.1} parent=1 // pred_fallthru
      _
    // Predicated region
    $region6: #{tpu_custom_call.1} parent=1 // pred_check
      _
    $region7: #{tpu_custom_call.1} parent=1 // pred_check_branch
      %22 = sbr.rel (0) target = $region9
    $region8: #{tpu_custom_call.1} parent=1 // pred_region
      %s24 = ssub.s32 256, 256
      %25 = vsyncadd [#allocation7], %s24
      %s26 = sshll.u32 [#allocation6], 4
      %s27 = int_to_ptr.vmem [resolvable:$true] %s26
      %32 = dma.hbm_to_vmem [thread:$0]  %s1, 256, %s27, [#allocation7], 128, 128, 8
    $region9: #{tpu_custom_call.1} parent=1 // pred_fallthru
      _
    // Predicated region
    $region10: #{tpu_custom_call.1} parent=1 // pred_check
      _
    $region11: #{tpu_custom_call.1} parent=1 // pred_check_branch
      %34 = sbr.rel (0) target = $region13
    $region12: #{tpu_custom_call.1} parent=1 // pred_region
      _
    $region13: #{tpu_custom_call.1} parent=1 // pred_fallthru
      _
    // Predicated region
    $region14: #{tpu_custom_call.1} parent=1 // pred_check
      _
    $region15: #{tpu_custom_call.1} parent=1 // pred_check_branch
      %36 = sbr.rel (0) target = $region17
    $region16: #{tpu_custom_call.1} parent=1 // pred_region
      %37 = dma.done [#allocation4], 128
    $region17: #{tpu_custom_call.1} parent=1 // pred_fallthru
      _
    // Predicated region
    $region18: #{tpu_custom_call.1} parent=1 // pred_check
      _
    $region19: #{tpu_custom_call.1} parent=1 // pred_check_branch
      %39 = sbr.rel (0) target = $region21
    $region20: #{tpu_custom_call.1} parent=1 // pred_region
      %40 = dma.done [#allocation7], 256
    $region21: #{tpu_custom_call.1} parent=1 // pred_fallthru
      _
    %p41 = scmp.eq.s32.totalorder 0, 0
    // Predicated region
    $region22: #{tpu_custom_call.1} parent=1 // pred_check
      %p42 = pneg %p41
    $region23: #{tpu_custom_call.1} parent=1 // pred_check_branch
      %44 = sbr.rel (%p42) target = $region25
    $region24: #{tpu_custom_call.1} parent=1 // pred_region
      %vm45 = vcmask 261120
      %46 = vst.msk [vmem:[#allocation2] sm:$0xff] %vm45, 0.0
    $region25: #{tpu_custom_call.1} parent=1 // pred_fallthru
      _
    %v47 = vld [vmem:[#allocation2] sm:$0xff]
    %v48 = vld [vmem:[#allocation3] sm:$0xff]
    %v49 = vld [vmem:[#allocation6] sm:$0xff]
    %v50 = vld [vmem:[#allocation6 + $0x8] sm:$0xff]
    %vm51 = vcmask 130048
    %v53 = vsel %vm51, %v48, 0
    %55 = vmatprep.subr.mxu0 0.0
    %56 = vmatpush1.msra.mxu0 %v49
    %57 = vmatprep.subr.mxu0 0.0
    %58 = vmatpush1.msra.mxu0 %v50
    %59 = vmatprep.subr.mxu0 0.0
    %60 = vmatpush1.msra.mxu0 0.0
    %61 = vmatprep.subr.mxu0 0.0
    %62 = vmatpush1.msra.mxu0 0.0
    %63 = vmatprep.subr.mxu0 0.0
    %64 = vmatpush1.msra.mxu0 0.0
    %65 = vmatprep.subr.mxu0 0.0
    %66 = vmatpush1.msra.mxu0 0.0
    %67 = vmatprep.subr.mxu0 0.0
    %68 = vmatpush1.msra.mxu0 0.0
    %69 = vmatprep.subr.mxu0 0.0
    %70 = vmatpush1.msra.mxu0 0.0
    %71 = vmatprep.subr.mxu0 0.0
    %72 = vmatpush1.msra.mxu0 0.0
    %73 = vmatprep.subr.mxu0 0.0
    %74 = vmatpush1.msra.mxu0 0.0
    %75 = vmatprep.subr.mxu0 0.0
    %76 = vmatpush1.msra.mxu0 0.0
    %77 = vmatprep.subr.mxu0 0.0
    %78 = vmatpush1.msra.mxu0 0.0
    %79 = vmatprep.subr.mxu0 0.0
    %80 = vmatpush1.msra.mxu0 0.0
    %81 = vmatprep.subr.mxu0 0.0
    %82 = vmatpush1.msra.mxu0 0.0
    %83 = vmatprep.subr.mxu0 0.0
    %84 = vmatpush1.msra.mxu0 0.0
    %85 = vmatprep.subr.mxu0 0.0
    %86 = vmatpush1.msra.mxu0 0.0
    %87 = vmatprep.subr.mxu0 0.0
    %88 = vmatpush1.msra.mxu0 0.0
    %89 = vmatprep.subr.mxu0 0.0
    %90 = vmatpush1.msra.mxu0 0.0
    %91 = vmatprep.subr.mxu0 0.0
    %92 = vmatpush1.msra.mxu0 0.0
    %93 = vmatprep.subr.mxu0 0.0
    %94 = vmatpush1.msra.mxu0 0.0
    %95 = vmatprep.subr.mxu0 0.0
    %96 = vmatpush1.msra.mxu0 0.0
    %97 = vmatprep.subr.mxu0 0.0
    %98 = vmatpush1.msra.mxu0 0.0
    %99 = vmatprep.subr.mxu0 0.0
    %100 = vmatpush1.msra.mxu0 0.0
    %101 = vmatprep.subr.mxu0 0.0
    %102 = vmatpush1.msra.mxu0 0.0
    %103 = vmatprep.subr.mxu0 0.0
    %104 = vmatpush1.msra.mxu0 0.0
    %105 = vmatprep.subr.mxu0 0.0
    %106 = vmatpush1.msra.mxu0 0.0
    %107 = vmatprep.subr.mxu0 0.0
    %108 = vmatpush1.msra.mxu0 0.0
    %109 = vmatprep.subr.mxu0 0.0
    %110 = vmatpush1.msra.mxu0 0.0
    %111 = vmatprep.subr.mxu0 0.0
    %112 = vmatpush1.msra.mxu0 0.0
    %113 = vmatprep.subr.mxu0 0.0
    %114 = vmatpush1.msra.mxu0 0.0
    %115 = vmatprep.subr.mxu0 0.0
    %116 = vmatpush1.msra.mxu0 0.0
    %117 = vmatprep.subr.mxu0 0.0
    %118 = vmatpush1.msra.mxu0 0.0
    %119 = vmatprep.mubr.f32.mxu0 0.0
    %120 = vmatmul.mubr.f32.gmra.mrb[0].mxu0 %v53
    %v121 = vpop.f32.mrb[0].mxu0
    %v122 = vadd.f32 0.0, %v121
    %v123 = vpop.f32.mrb[0].mxu0
    %124 = vdwg.mxu0
    %v125 = vadd.f32 %v47, %v122
    %vm126 = vcmask 261120
    %127 = vst.msk [vmem:[#allocation2] sm:$0xff] %vm126, %v125
    // Predicated region
    $region26: #{tpu_custom_call.1} parent=1 // pred_check
      %p128 = pneg %p41
    $region27: #{tpu_custom_call.1} parent=1 // pred_check_branch
      %130 = sbr.rel (%p128) target = $region29
    $region28: #{tpu_custom_call.1} parent=1 // pred_region
      %v131 = vld [vmem:[#allocation2] sm:$0xff]
      %v132 = vld [vmem:[%s2] sm:$0x1]
      %v133 = vlaneseq
      %v134 = vshrl.u32 %v133, 7
      %v135 = vsub.s32 0, %v134
      %v136 = vrot.slane %v132, %v135
      %v137 = vadd.f32 %v131, %v136
      %v138 = vsel %vm126, %v137, 0.0
      %139 = vadd.xlane.f32.xlu0 %v138
      %v140 = vpop.xlane.xlu0 %139
      %v141 = vmul.f32 %v137, %v137
      %v142 = vsel %vm126, %v141, 0.0
      %143 = vadd.xlane.f32.xlu0 %v142
      %v144 = vpop.xlane.xlu0 %143
      %v145 = vmul.f32 %v140, 0.03125
      %v146 = vmul.f32 %v144, 0.03125
      %v147 = vmul.f32 %v145, %v145
      %v148 = vsub.f32 %v146, %v147
      %v149 = vmax.f32 %v148, 0.0
      %v150 = vadd.f32 %v149, 1e-05
      %v151 = vrsqrt.pop %v150
      %v152 = vsub.f32 %v137, %v145
      %v153 = vmul.f32 %v152, %v151
      %v154 = vld [vmem:[%s2 + $0x1] sm:$0x1]
      %v155 = vlaneseq
      %v156 = vshrl.u32 %v155, 7
      %v157 = vsub.s32 0, %v156
      %v158 = vrot.slane %v154, %v157
      %v159 = vmul.f32 %v153, %v158
      %v160 = vld [vmem:[%s2 + $0x2] sm:$0x1]
      %v161 = vlaneseq
      %v162 = vshrl.u32 %v161, 7
      %v163 = vsub.s32 0, %v162
      %v164 = vrot.slane %v160, %v163
      %v165 = vadd.f32 %v159, %v164
      %166 = vst.msk [vmem:[#allocation8] sm:$0xff] %vm126, %v165
    $region29: #{tpu_custom_call.1} parent=1 // pred_fallthru
      _
    // Predicated region
    $region30: #{tpu_custom_call.1} parent=1 // pred_check
      _
    $region31: #{tpu_custom_call.1} parent=1 // pred_check_branch
      %168 = sbr.rel (0) target = $region33
    $region32: #{tpu_custom_call.1} parent=1 // pred_region
      %s170 = ssub.s32 128, 128
      %171 = vsyncadd [#allocation5], %s170
      %s173 = sshll.u32 [#allocation8], 4
      %s174 = int_to_ptr.vmem [resolvable:$true] %s173
      %176 = dma.vmem_to_hbm [thread:$0]  %s174, 128, %s3, [#allocation5]
    $region33: #{tpu_custom_call.1} parent=1 // pred_fallthru
      _
    // Predicated region
    $region34: #{tpu_custom_call.1} parent=1 // pred_check
      _
    $region35: #{tpu_custom_call.1} parent=1 // pred_check_branch
      %178 = sbr.rel (0) target = $region37
    $region36: #{tpu_custom_call.1} parent=1 // pred_region
      %179 = dma.done [#allocation5], 128
    $region37: #{tpu_custom_call.1} parent=1 // pred_fallthru
      _
    %180 = vsyncpa [#allocation4], 1
    %181 = vsyncpa [#allocation7], 1
    %182 = vsyncpa [#allocation5], 1

</llo_original>
